<compile_context>
chip_gen: v7x
topology: tpu7x:2x2x1
jax: 0.10.0
libtpu: 0.0.40
codegen_flags: <defaults>
</compile_context>

<pallas_src>
import jax
import jax.numpy as jnp
from jax.experimental import pallas as pl
from jax.experimental.pallas import tpu as pltpu


def _bg_former_kernel(img_ref, org_ref, bgc_ref, out_ref):
    out_dt = out_ref.dtype
    img = img_ref[...]                              # (1, C, TR, 128) or (1, C, TW)
    img0 = img[:, 0:1]                              # channel-0 mask slab (same tile)
    bg_plus_org = bgc_ref[...].astype(out_dt) + org_ref[...].astype(out_dt)
    zero = jnp.zeros((), out_dt)
    # Folded:  bg_where * (bg_color + org_img) + img
    bg_add = jnp.where(img0 == 0, bg_plus_org, zero)
    out_ref[...] = bg_add + img.astype(out_dt)


def _sublane_pack(dtype):
    # f32 -> 8, bf16 -> 16, int8/fp8 -> 32 sublane packing.
    return max(8, 32 // jnp.dtype(dtype).itemsize)


def _chip_budget():
    """(per-array block byte target, VMEM capacity) — chip aware, safe fallback."""
    try:
        cap = int(pltpu.get_tpu_info().vmem_capacity_bytes)
    except Exception:  # not on TPU / API mismatch: assume 128 MiB class
        cap = 128 * 1024 * 1024
    if cap <= 64 * 1024 * 1024:          # v7x-class: 64 MiB VMEM, 3.2 TB/s HBM
        return 5 * 1024 * 1024, cap
    return 4 * 1024 * 1024, cap          # v5e / v6e


def _round_up(x, m):
    return -(-x // m) * m


def bg_former6d(img, mask, bg_color, org_img, *, donate_img=False):
    """JAX/Pallas equivalent of bg_former6D.forward.

    img, org_img : [B, C, H, W]
    mask         : unused (matches the PyTorch reference, which ignores it)
    bg_color     : broadcastable to [B, C, H, W] (typically [1, C, 1, 1])
    donate_img   : if True (and dtypes match), write the result in place over img.
    """
    del mask  # unused in the reference forward

    img = jnp.asarray(img)
    org_img = jnp.asarray(org_img)
    bgc = jnp.asarray(bg_color)

    B, C, H, W = img.shape
    HW = H * W

    out_dtype = jnp.result_type(img.dtype, org_img.dtype, bgc.dtype)
    isz_img = jnp.dtype(img.dtype).itemsize
    isz_org = jnp.dtype(org_img.dtype).itemsize
    isz_out = jnp.dtype(out_dtype).itemsize
    isz_max = max(isz_img, isz_org, isz_out)
    sub = _sublane_pack(out_dtype)

    target_bytes, vmem_cap = _chip_budget()

    # --- normalize bg_color to a 4D broadcast view --------------------------
    pshape = (1,) * (4 - bgc.ndim) + tuple(bgc.shape)
    bgc4 = bgc.reshape(pshape)
    Bb, Cb, Hb, Wb = pshape
    spatial_const = (Hb == 1 and Wb == 1)
    if not spatial_const and (Hb, Wb) != (H, W):
        # Rare mixed spatial broadcast: materialize spatial dims only
        # (batch/channel stay at native extent).
        bgc4 = jnp.broadcast_to(bgc4, (Bb, Cb, H, W))
        Hb, Wb = H, W

    lanes_ok = (HW % 128 == 0)

    if lanes_ok:
        # ---- 4D lane/sublane-dense layout: (B, C, R, 128), block (1, C, TR, 128)
        R = HW // 128
        tr = (target_bytes // (C * 128 * isz_max)) // sub * sub
        tr = max(sub, tr)
        TR = R if (tr >= R or R < sub) else int(tr)
        S = pl.cdiv(R, TR)

        img_v = img.reshape(B, C, R, 128)
        org_v = org_img.reshape(B, C, R, 128)
        blk = (1, C, TR, 128)
        block_padded_elems = C * _round_up(TR, sub) * 128

        if spatial_const:
            bgc_v = bgc4.reshape(Bb, Cb, 1, 1)
            bgc_blk = (1, Cb, 1, 1)
        else:
            bgc_v = bgc4.reshape(Bb, Cb, R, 128)
            bgc_blk = (1, Cb, TR, 128)

        def data_map(b, s):
            return (b, 0, s, 0)

        def bgc_map(b, s):
            bb = b if Bb != 1 else 0
            ss = 0 if spatial_const else s
            return (bb, 0, ss, 0)

        out_view_shape = (B, C, R, 128)
    else:
        # ---- 3D fallback: (B, C, HW), block (1, C, TW); size with padded C ----
        padded_c = _round_up(C, sub)
        tw = (target_bytes // (padded_c * isz_max)) // 128 * 128
        tw = max(128, tw)
        TW = HW if tw >= HW else int(tw)
        S = pl.cdiv(HW, TW)

        img_v = img.reshape(B, C, HW)
        org_v = org_img.reshape(B, C, HW)
        blk = (1, C, TW)
        block_padded_elems = padded_c * _round_up(TW, 128)

        if spatial_const:
            bgc_v = bgc4.reshape(Bb, Cb, 1)
            bgc_blk = (1, Cb, 1)
        else:
            bgc_v = bgc4.reshape(Bb, Cb, HW)
            bgc_blk = (1, Cb, TW)

        def data_map(b, s):
            return (b, 0, s)

        def bgc_map(b, s):
            bb = b if Bb != 1 else 0
            ss = 0 if spatial_const else s
            return (bb, 0, ss)

        out_view_shape = (B, C, HW)

    # --- grid (drop the batch axis when B == 1 so the spatial axis feeds the
    #     megacore split on v7x) ----------------------------------------------
    if B == 1:
        grid = (S,)
        dim_sem = ("parallel",)
        img_map = lambda s: data_map(0, s)
        org_map = lambda s: data_map(0, s)
        bg_map = lambda s: bgc_map(0, s)
        out_map = lambda s: data_map(0, s)
    else:
        grid = (B, S)
        dim_sem = ("parallel", "parallel")
        img_map = data_map
        org_map = data_map
        bg_map = bgc_map
        out_map = data_map

    in_specs = [
        pl.BlockSpec(blk, img_map),       # img (mask taken from its channel 0)
        pl.BlockSpec(blk, org_map),       # org_img (cast in-kernel if needed)
        pl.BlockSpec(bgc_blk, bg_map),    # bg_color (tiny in the common case)
    ]
    out_spec = pl.BlockSpec(blk, out_map)

    # VMEM budget: 2x double-buffered blocks of the 3 streamed arrays + slack,
    # clamped to leave headroom below physical VMEM.
    per_step = block_padded_elems * (isz_img + isz_org + isz_out)
    vmem_limit = int(
        min(vmem_cap - 8 * 1024 * 1024,
            max(32 * 1024 * 1024, 2 * per_step + 4 * 1024 * 1024))
    )

    bg_bytes = int(bgc_v.size) * jnp.dtype(bgc_v.dtype).itemsize
    cost = pl.CostEstimate(
        flops=4 * B * C * HW,
        transcendentals=0,
        bytes_accessed=B * C * HW * (isz_img + isz_org + isz_out) + bg_bytes,
    )

    aliases = {0: 0} if (donate_img and img.dtype == out_dtype) else {}

    out_v = pl.pallas_call(
        _bg_former_kernel,
        out_shape=jax.ShapeDtypeStruct(out_view_shape, out_dtype),
        grid_spec=pl.GridSpec(grid=grid, in_specs=in_specs, out_specs=out_spec),
        compiler_params=pltpu.CompilerParams(
            dimension_semantics=dim_sem,
            vmem_limit_bytes=vmem_limit,
        ),
        cost_estimate=cost,
        input_output_aliases=aliases,
    )(img_v, org_v, bgc_v)

    return out_v.reshape(B, C, H, W)


def _reference(img, bg_color, org_img):
    bg_where = jnp.where(img == 0, 1.0, 0.0)[:, 0:1, :, :]
    return bg_where * bg_color + img + bg_where * org_img


if __name__ == "__main__":
    key = jax.random.PRNGKey(0)
    k1, k2, k3, k4 = jax.random.split(key, 4)

    B, C, H, W = 2, 4, 16, 16

    # img with some exact zeros so bg_where is non-trivial
    raw = jax.random.uniform(k1, (B, C, H, W), dtype=jnp.float32)
    keep = jax.random.uniform(k2, (B, 1, H, W)) > 0.4
    img = jnp.where(keep, raw, 0.0)

    mask = jax.random.uniform(k3, (B, 1, H, W), dtype=jnp.float32)  # unused
    bg_color = jnp.arange(1, C + 1, dtype=jnp.float32).reshape(1, C, 1, 1) * 0.1
    org_img = jax.random.uniform(k4, (B, C, H, W), dtype=jnp.float32)

    out = bg_former6d(img, mask, bg_color, org_img)
    out = jax.block_until_ready(out)

    ref = _reference(img, bg_color, org_img)
    assert out.shape == (B, C, H, W)
    assert out.dtype == ref.dtype
    assert jnp.allclose(out, ref, atol=1e-6), "mismatch vs reference"

    print("KERNEL_OK")
</pallas_src>

<mosaic_0001>
module attributes {stable_mosaic.version = 11 : i64} {
  func.func @_bg_former_kernel(%arg0: i32, %arg1: i32, %arg2: memref<1x4x2x128xf32, #tpu.memory_space<vmem>>, %arg3: memref<1x4x2x128xf32, #tpu.memory_space<vmem>>, %arg4: memref<1x4x1x1xf32, #tpu.memory_space<vmem>>, %arg5: memref<1x4x2x128xf32, #tpu.memory_space<vmem>>) attributes {dimension_semantics = [#tpu.dimension_semantics<parallel>, #tpu.dimension_semantics<parallel>], iteration_bounds = array<i64: 2, 1>, scalar_prefetch = 0 : i64, scratch_operands = 0 : i64, tpu.core_type = #tpu.core_type<tc>, window_params = [{transform_indices = @transform_0, window_bounds = array<i64: 1, 4, 2, 128>}, {transform_indices = @transform_1, window_bounds = array<i64: 1, 4, 2, 128>}, {pipeline_mode = #tpu.pipeline_mode<synchronous>, transform_indices = @transform_2, window_bounds = array<i64: 1, 4, 1, 1>}, {transform_indices = @transform_3, window_bounds = array<i64: 1, 4, 2, 128>}]} {
    %c0 = arith.constant 0 : index
    %c0_0 = arith.constant 0 : index
    %c0_1 = arith.constant 0 : index
    %c0_2 = arith.constant 0 : index
    %0 = vector.load %arg2[%c0, %c0_0, %c0_1, %c0_2] : memref<1x4x2x128xf32, #tpu.memory_space<vmem>>, vector<1x4x2x128xf32>
    %1 = vector.extract_strided_slice %0 {offsets = [0, 0, 0, 0], sizes = [1, 1, 2, 128], strides = [1, 1, 1, 1]} : vector<1x4x2x128xf32> to vector<1x1x2x128xf32>
    %c0_3 = arith.constant 0 : index
    %c0_4 = arith.constant 0 : index
    %c0_5 = arith.constant 0 : index
    %c0_6 = arith.constant 0 : index
    %2 = vector.load %arg4[%c0_3, %c0_4, %c0_5, %c0_6] : memref<1x4x1x1xf32, #tpu.memory_space<vmem>>, vector<1x4x1x1xf32>
    %c0_7 = arith.constant 0 : index
    %c0_8 = arith.constant 0 : index
    %c0_9 = arith.constant 0 : index
    %c0_10 = arith.constant 0 : index
    %3 = vector.load %arg3[%c0_7, %c0_8, %c0_9, %c0_10] : memref<1x4x2x128xf32, #tpu.memory_space<vmem>>, vector<1x4x2x128xf32>
    %4 = vector.broadcast %2 : vector<1x4x1x1xf32> to vector<1x4x2x128xf32>
    %5 = arith.addf %4, %3 : vector<1x4x2x128xf32>
    %cst = arith.constant 0.000000e+00 : f32
    %6 = vector.broadcast %cst : f32 to vector<1x1x2x128xf32>
    %7 = arith.cmpf oeq, %1, %6 : vector<1x1x2x128xf32>
    %cst_11 = arith.constant 0.000000e+00 : f32
    %8 = vector.shape_cast %7 : vector<1x1x2x128xi1> to vector<1x1x2x128xi1>
    %9 = vector.broadcast %8 : vector<1x1x2x128xi1> to vector<1x4x2x128xi1>
    %10 = vector.broadcast %cst_11 : f32 to vector<1x4x2x128xf32>
    %11 = arith.select %9, %5, %10 : vector<1x4x2x128xi1>, vector<1x4x2x128xf32>
    %12 = arith.addf %11, %0 : vector<1x4x2x128xf32>
    %c0_12 = arith.constant 0 : index
    %c0_13 = arith.constant 0 : index
    %c0_14 = arith.constant 0 : index
    %c0_15 = arith.constant 0 : index
    %13 = vector.load %arg5[%c0_12, %c0_13, %c0_14, %c0_15] : memref<1x4x2x128xf32, #tpu.memory_space<vmem>>, vector<1x4x2x128xf32>
    tpu.vector_store %arg5[%c0_12, %c0_13, %c0_14, %c0_15], %12 {strides = array<i32>} : memref<1x4x2x128xf32, #tpu.memory_space<vmem>>, vector<1x4x2x128xf32>,
    return
  }
  func.func @transform_0(%arg0: i32, %arg1: i32) -> (i32, i32, i32, i32) {
    %c0_i32 = arith.constant 0 : i32
    %c0_i32_0 = arith.constant 0 : i32
    %c0_i32_1 = arith.constant 0 : i32
    return %arg0, %c0_i32, %arg1, %c0_i32_0 : i32, i32, i32, i32
  }
  func.func @transform_1(%arg0: i32, %arg1: i32) -> (i32, i32, i32, i32) {
    %c0_i32 = arith.constant 0 : i32
    %c0_i32_0 = arith.constant 0 : i32
    %c0_i32_1 = arith.constant 0 : i32
    return %arg0, %c0_i32, %arg1, %c0_i32_0 : i32, i32, i32, i32
  }
  func.func @transform_2(%arg0: i32, %arg1: i32) -> (i32, i32, i32, i32) {
    %c0_i32 = arith.constant 0 : i32
    %c0_i32_0 = arith.constant 0 : i32
    %c0_i32_1 = arith.constant 0 : i32
    %c0_i32_2 = arith.constant 0 : i32
    %c0_i32_3 = arith.constant 0 : i32
    return %c0_i32, %c0_i32_0, %c0_i32_1, %c0_i32_2 : i32, i32, i32, i32
  }
  func.func @transform_3(%arg0: i32, %arg1: i32) -> (i32, i32, i32, i32) {
    %c0_i32 = arith.constant 0 : i32
    %c0_i32_0 = arith.constant 0 : i32
    %c0_i32_1 = arith.constant 0 : i32
    return %arg0, %c0_i32, %arg1, %c0_i32_0 : i32, i32, i32, i32
  }
}

</mosaic_0001>

<llo_original>
// kernel: tpu_custom_call.1
$region0: #{tpu_custom_call.1}
  #allocation0 [shape = 'u32[]', space=smem, size = 0x4, offset = 0x4, fixed_abs, tag = 'smem constant byte address 0x4 - core index']
  #allocation1 [shape = 'u32[144,128]{1,0:T(1,128)}', space=vmem, size = 0x12000, scoped, tag = 'internal scratch']
  %s0 = inlined_call_operand.hbm [shape: f32[2,4,2,128], index: 0, kind: input, shape index: {}]
  %s1 = inlined_call_operand.hbm [shape: f32[2,4,2,128], index: 1, kind: input, shape index: {}]
  %s2 = inlined_call_operand.vmem [shape: f32[1,4,1,1], index: 2, kind: input, shape index: {}]
  %s3 = inlined_call_operand.hbm [shape: f32[2,4,2,128], index: 3, kind: output, shape index: {}]
  %s4 = sld [smem:[#allocation0]]
  $region53: #{tpu_custom_call.1} parent=0
    _
  %s6 = ssub.s32 1, %s4
  %s7 = scalar_select 0, %s6, %s4
  $region1: #{tpu_custom_call.1} parent=0
    #allocation2 [shape = 'u8[8192]{0}', space=vmem, size = 0x2000, scoped, tag = 'input window, operand 0']
    #allocation3 [shape = 's32[2]{0}', space=sflag, size = 0x8, scoped, tag = 'scoped memory for tpu_custom_call.1']
    #allocation4 [shape = 's32[2]{0}', space=sflag, size = 0x8, scoped, tag = 'scoped memory for tpu_custom_call.1']
    #allocation5 [shape = 'u8[8192]{0}', space=vmem, size = 0x2000, scoped, tag = 'input window, operand 1']
    #allocation6 [shape = 's32[2]{0}', space=sflag, size = 0x8, scoped, tag = 'scoped memory for tpu_custom_call.1']
    #allocation7 [shape = 'u8[8192]{0}', space=vmem, size = 0x2000, scoped, tag = 'output window, operand 0']
    %8 = vsyncpa [#allocation3], 0
    %s9 = scalar_lea.sflag [#allocation3], 1
    %10 = vsyncpa %s9, 0
    %11 = vsyncpa [#allocation6], 0
    %s12 = scalar_lea.sflag [#allocation6], 1
    %13 = vsyncpa %s12, 0
    %14 = vsyncpa [#allocation4], 0
    %s15 = scalar_lea.sflag [#allocation4], 1
    %16 = vsyncpa %s15, 0
    loop: start=0, step=1, limit=4
    $region2: #{tpu_custom_call.1} parent=1 // loop_pre_header
      _
    $region3: #{tpu_custom_call.1} parent=1 // loop_header
      %s18 = sphi 0, %s22
      %p19 = scmp.ge.s32.totalorder %s18, 4
      %s25 = sphi 0, %s37
      %s26 = sphi 0, %s33
      %s27 = sphi 0, %s25
      %s28 = sphi 0, %s26
      %s29 = sphi 0, %s27
      %s30 = sphi 0, %s28
      %s42 = sphi 0, %s44
      %s45 = sphi 0, %s42
      %s46 = sphi 0, %s45
      %s62 = sphi 0, %s46
      %s70 = sphi 0, %s72
      %s73 = sphi 0, %s70
      %s74 = sphi 0, %s73
      %s90 = sphi 0, %s74
      %s94 = sphi 0, %s94
      %s96 = sphi 0, %s94
      %s97 = sphi 0, %s96
      %s111 = sphi 0, %s97
      %s119 = sphi 0, %s121
      %s122 = sphi 0, %s119
      %s123 = sphi 0, %s122
      %s139 = sphi 0, %s123
    $region4: #{tpu_custom_call.1} parent=1 // loop_header_branch
      %21 = sbr.rel (%p19) target = $region8
    $region5: #{tpu_custom_call.1} parent=1 // loop_body
      %s23 = ssub.s32 %s18, 1
      %s24 = ssub.s32 %s18, 2
      %s31 = sadd.s32 1, %s26
      %p32 = scmp.ge.s32.totalorder %s31, 1
      %s33 = scalar_select %p32, 0, %s31
      %s34 = sadd.s32 1, %s25
      %s35 = scalar_select %p32, %s34, %s25
      %p36 = scmp.ge.s32.totalorder %s35, 2
      %s37 = scalar_select %p36, 0, %s35
      %s38 = ssub.s32 %s25, %s37
      %s39 = ssub.s32 %s26, %s33
      %s40 = sor.u32 %s38, %s39
      %p41 = scmp.eq.s32.totalorder %s40, 0
      %s43 = sadd.s32 %s42, 1
      %s44 = scalar_select %p41, %s42, %s43
      %p47 = pneg %p41
      %p48 = scmp.eq.s32.totalorder %s18, 1
      %p49 = por %p47, %p48
      %p50 = scmp.ne.s32.totalorder %s42, %s45
      %p51 = scmp.eq.s32.totalorder %s18, 0
      %p52 = por %p50, %p51
      %p53 = scmp.ne.s32.totalorder %s42, %s45
      %p54 = scmp.eq.s32.totalorder %s23, 1
      %p55 = por %p53, %p54
      %p56 = scmp.ne.s32.totalorder %s45, %s46
      %p57 = scmp.eq.s32.totalorder %s23, 0
      %p58 = por %p56, %p57
      %p59 = scmp.ne.s32.totalorder %s45, %s46
      %p60 = scmp.eq.s32.totalorder %s24, 1
      %p61 = por %p59, %p60
      %p63 = scmp.ne.s32.totalorder %s46, %s62
      %p64 = scmp.eq.s32.totalorder %s24, 0
      %p65 = por %p63, %p64
      %s66 = ssub.s32 %s25, %s37
      %s67 = ssub.s32 %s26, %s33
      %s68 = sor.u32 %s66, %s67
      %p69 = scmp.eq.s32.totalorder %s68, 0
      %s71 = sadd.s32 %s70, 1
      %s72 = scalar_select %p69, %s70, %s71
      %p75 = pneg %p69
      %p76 = scmp.eq.s32.totalorder %s18, 1
      %p77 = por %p75, %p76
      %p78 = scmp.ne.s32.totalorder %s70, %s73
      %p79 = scmp.eq.s32.totalorder %s18, 0
      %p80 = por %p78, %p79
      %p81 = scmp.ne.s32.totalorder %s70, %s73
      %p82 = scmp.eq.s32.totalorder %s23, 1
      %p83 = por %p81, %p82
      %p84 = scmp.ne.s32.totalorder %s73, %s74
      %p85 = scmp.eq.s32.totalorder %s23, 0
      %p86 = por %p84, %p85
      %p87 = scmp.ne.s32.totalorder %s73, %s74
      %p88 = scmp.eq.s32.totalorder %s24, 1
      %p89 = por %p87, %p88
      %p91 = scmp.ne.s32.totalorder %s74, %s90
      %p92 = scmp.eq.s32.totalorder %s24, 0
      %p93 = por %p91, %p92
      %s95 = sadd.s32 %s94, 1
      %p98 = scmp.eq.s32.totalorder %s18, 1
      %p99 = scmp.ne.s32.totalorder %s94, %s96
      %p100 = scmp.eq.s32.totalorder %s18, 0
      %p101 = por %p99, %p100
      %p102 = scmp.ne.s32.totalorder %s94, %s96
      %p103 = scmp.eq.s32.totalorder %s23, 1
      %p104 = por %p102, %p103
      %p105 = scmp.ne.s32.totalorder %s96, %s97
      %p106 = scmp.eq.s32.totalorder %s23, 0
      %p107 = por %p105, %p106
      %p108 = scmp.ne.s32.totalorder %s96, %s97
      %p109 = scmp.eq.s32.totalorder %s24, 1
      %p110 = por %p108, %p109
      %p112 = scmp.ne.s32.totalorder %s97, %s111
      %p113 = scmp.eq.s32.totalorder %s24, 0
      %p114 = por %p112, %p113
      %s115 = ssub.s32 %s25, %s37
      %s116 = ssub.s32 %s26, %s33
      %s117 = sor.u32 %s115, %s116
      %p118 = scmp.eq.s32.totalorder %s117, 0
      %s120 = sadd.s32 %s119, 1
      %s121 = scalar_select %p118, %s119, %s120
      %p124 = pneg %p118
      %p125 = scmp.eq.s32.totalorder %s18, 1
      %p126 = por %p124, %p125
      %p127 = scmp.ne.s32.totalorder %s119, %s122
      %p128 = scmp.eq.s32.totalorder %s18, 0
      %p129 = por %p127, %p128
      %p130 = scmp.ne.s32.totalorder %s119, %s122
      %p131 = scmp.eq.s32.totalorder %s23, 1
      %p132 = por %p130, %p131
      %p133 = scmp.ne.s32.totalorder %s122, %s123
      %p134 = scmp.eq.s32.totalorder %s23, 0
      %p135 = por %p133, %p134
      %p136 = scmp.ne.s32.totalorder %s122, %s123
      %p137 = scmp.eq.s32.totalorder %s24, 1
      %p138 = por %p136, %p137
      %p140 = scmp.ne.s32.totalorder %s123, %s139
      %p141 = scmp.eq.s32.totalorder %s24, 0
      %p142 = por %p140, %p141
      %p143 = scmp.le.s32.totalorder 1, %s18
      %p144 = scmp.lt.s32.totalorder %s18, 3
      %p145 = pnand %p143, %p144
      %p146 = pneg %p145
      // Predicated region
      $region9: #{tpu_custom_call.1} parent=5 // pred_check
        _
      $region10: #{tpu_custom_call.1} parent=5 // pred_check_branch
        %148 = sbr.rel (%p145) target = $region12
      $region11: #{tpu_custom_call.1} parent=5 // pred_region
        %s149 = ssub.s32 %s18, 1
        // Predicated region
        $region13: #{tpu_custom_call.1} parent=11 // pred_check
          %p150 = pneg %p107
        $region14: #{tpu_custom_call.1} parent=11 // pred_check_branch
          %152 = sbr.rel (%p150) target = $region16
        $region15: #{tpu_custom_call.1} parent=11 // pred_region
          _
        $region16: #{tpu_custom_call.1} parent=11 // pred_fallthru
          _
      $region12: #{tpu_custom_call.1} parent=5 // pred_fallthru
        _
      %p153 = scmp.lt.s32.totalorder %s18, 2
      // Predicated region
      $region17: #{tpu_custom_call.1} parent=5 // pred_check
        %p154 = pneg %p153
      $region18: #{tpu_custom_call.1} parent=5 // pred_check_branch
        %156 = sbr.rel (%p154) target = $region20
      $region19: #{tpu_custom_call.1} parent=5 // pred_region
        // Predicated region
        $region21: #{tpu_custom_call.1} parent=19 // pred_check
          %p157 = pneg %p52
        $region22: #{tpu_custom_call.1} parent=19 // pred_check_branch
          %159 = sbr.rel (%p157) target = $region24
        $region23: #{tpu_custom_call.1} parent=19 // pred_region
          %s160 = sand.u32 %s42, 1
          %s161 = scalar_lea.sflag [#allocation3], %s160
          %s162 = sand.u32 %s42, 1
          %s163 = smul.addr %s162, 8
          %s164 = scalar_lea.vmem [#allocation2], %s163
          %s166 = ssub.s32 128, 128
          %167 = vsyncadd %s161, %s166
          %s168 = smul.addr %s25, 4
          %s169 = sadd.s32 %s26, %s168
          %s170 = smul.addr %s169, 32
          %s171 = scalar_lea.hbm %s0, %s170
          %s172 = sshll.u32 %s164, 4
          %s173 = int_to_ptr.vmem [resolvable:$true] %s172
          %178 = dma.hbm_to_vmem [thread:$0]  %s171, 128, %s173, %s161, 32, 32, 2
        $region24: #{tpu_custom_call.1} parent=19 // pred_fallthru
          _
        // Predicated region
        $region25: #{tpu_custom_call.1} parent=19 // pred_check
          %p179 = pneg %p80
        $region26: #{tpu_custom_call.1} parent=19 // pred_check_branch
          %181 = sbr.rel (%p179) target = $region28
        $region27: #{tpu_custom_call.1} parent=19 // pred_region
          %s182 = sand.u32 %s70, 1
          %s183 = scalar_lea.sflag [#allocation6], %s182
          %s184 = sand.u32 %s70, 1
          %s185 = smul.addr %s184, 8
          %s186 = scalar_lea.vmem [#allocation5], %s185
          %s188 = ssub.s32 128, 128
          %189 = vsyncadd %s183, %s188
          %s190 = smul.addr %s25, 4
          %s191 = sadd.s32 %s26, %s190
          %s192 = smul.addr %s191, 32
          %s193 = scalar_lea.hbm %s1, %s192
          %s194 = sshll.u32 %s186, 4
          %s195 = int_to_ptr.vmem [resolvable:$true] %s194
          %200 = dma.hbm_to_vmem [thread:$0]  %s193, 128, %s195, %s183, 32, 32, 2
        $region28: #{tpu_custom_call.1} parent=19 // pred_fallthru
          _
      $region20: #{tpu_custom_call.1} parent=5 // pred_fallthru
        _
      %p201 = scmp.le.s32.totalorder 1, %s18
      %p202 = scmp.lt.s32.totalorder %s18, 3
      %p203 = pnand %p201, %p202
      %p204 = pneg %p203
      // Predicated region
      $region29: #{tpu_custom_call.1} parent=5 // pred_check
        _
      $region30: #{tpu_custom_call.1} parent=5 // pred_check_branch
        %206 = sbr.rel (%p203) target = $region32
      $region31: #{tpu_custom_call.1} parent=5 // pred_region
        %s207 = ssub.s32 %s18, 1
        %s208 = sand.u32 %s45, 1
        %s209 = scalar_lea.sflag [#allocation3], %s208
        %s210 = sand.u32 %s45, 1
        %s211 = smul.addr %s210, 8
        %s212 = scalar_lea.vmem [#allocation2], %s211
        // Predicated region
        $region33: #{tpu_custom_call.1} parent=31 // pred_check
          %p213 = pneg %p58
        $region34: #{tpu_custom_call.1} parent=31 // pred_check_branch
          %215 = sbr.rel (%p213) target = $region36
        $region35: #{tpu_custom_call.1} parent=31 // pred_region
          %216 = dma.done %s209, 128
        $region36: #{tpu_custom_call.1} parent=31 // pred_fallthru
          _
        %s217 = sand.u32 %s73, 1
        %s218 = scalar_lea.sflag [#allocation6], %s217
        %s219 = sand.u32 %s73, 1
        %s220 = smul.addr %s219, 8
        %s221 = scalar_lea.vmem [#allocation5], %s220
        // Predicated region
        $region37: #{tpu_custom_call.1} parent=31 // pred_check
          %p222 = pneg %p86
        $region38: #{tpu_custom_call.1} parent=31 // pred_check_branch
          %224 = sbr.rel (%p222) target = $region40
        $region39: #{tpu_custom_call.1} parent=31 // pred_region
          %225 = dma.done %s218, 128
        $region40: #{tpu_custom_call.1} parent=31 // pred_fallthru
          _
        %s226 = sand.u32 %s45, 1
        %s227 = scalar_lea.sflag [#allocation3], %s226
        %s228 = sand.u32 %s45, 1
        %s229 = smul.addr %s228, 8
        %s230 = scalar_lea.vmem [#allocation2], %s229
        %p231 = pneg %p58
        %p232 = pneg %p55
        %s233 = sand.u32 %s73, 1
        %s234 = scalar_lea.sflag [#allocation6], %s233
        %s235 = sand.u32 %s73, 1
        %s236 = smul.addr %s235, 8
        %s237 = scalar_lea.vmem [#allocation5], %s236
        %p238 = pneg %p86
        %p239 = pneg %p83
        %p240 = pneg %p107
        %p241 = pneg %p104
        %p242 = pneg %p135
        %p243 = pneg %p132
        %s244 = sand.u32 %s122, 1
        %s245 = scalar_lea.sflag [#allocation4], %s244
        %s246 = sand.u32 %s122, 1
        %s247 = smul.addr %s246, 8
        %s248 = scalar_lea.vmem [#allocation7], %s247
        %v249 = vld [vmem:[%s212] sm:$0x3]
        %v250 = vld [vmem:[%s212 + $0x2] sm:$0x3]
        %v251 = vld [vmem:[%s212 + $0x4] sm:$0x3]
        %v252 = vld [vmem:[%s212 + $0x6] sm:$0x3]
        %v253 = vld [vmem:[%s2] sm:$0x1]
        %v254 = vld [vmem:[%s2 + $0x1] sm:$0x1]
        %v255 = vld [vmem:[%s2 + $0x2] sm:$0x1]
        %v256 = vld [vmem:[%s2 + $0x3] sm:$0x1]
        %v257 = vld [vmem:[%s221] sm:$0x3]
        %v258 = vld [vmem:[%s221 + $0x2] sm:$0x3]
        %v259 = vld [vmem:[%s221 + $0x4] sm:$0x3]
        %v260 = vld [vmem:[%s221 + $0x6] sm:$0x3]
        %v265 = vlaneseq
        %v266 = vshrl.u32 %v265, 7
        %v267 = vsub.s32 0, %v266
        %v268 = vrot.slane %v253, %v267
        %v269 = vlaneseq
        %v270 = vshrl.u32 %v269, 7
        %v271 = vsub.s32 0, %v270
        %v272 = vrot.slane %v254, %v271
        %v273 = vlaneseq
        %v274 = vshrl.u32 %v273, 7
        %v275 = vsub.s32 0, %v274
        %v276 = vrot.slane %v255, %v275
        %v277 = vlaneseq
        %v278 = vshrl.u32 %v277, 7
        %v279 = vsub.s32 0, %v278
        %v280 = vrot.slane %v256, %v279
        %281 = vset.pattern.permute.xlu0 0
        %282 = vperm.xlu0 %281, %v268
        %v283 = vpop.permute.xlu0 %282
        %285 = vset.pattern.permute.xlu0 0
        %286 = vperm.xlu0 %285, %v272
        %v287 = vpop.permute.xlu0 %286
        %289 = vset.pattern.permute.xlu0 0
        %290 = vperm.xlu0 %289, %v276
        %v291 = vpop.permute.xlu0 %290
        %293 = vset.pattern.permute.xlu0 0
        %294 = vperm.xlu0 %293, %v280
        %v295 = vpop.permute.xlu0 %294
        %v297 = vadd.f32 %v283, %v257
        %v298 = vadd.f32 %v287, %v258
        %v299 = vadd.f32 %v291, %v259
        %v300 = vadd.f32 %v295, %v260
        %vm301 = vcmp.eq.f32.partialorder %v249, 0.0
        %v302 = vsel %vm301, 1, 0
        %vm303 = vcmp.eq.s32.totalorder %v302, 1
        %v304 = vsel %vm303, %v297, 0.0
        %v305 = vsel %vm303, %v298, 0.0
        %v306 = vsel %vm303, %v299, 0.0
        %v307 = vsel %vm303, %v300, 0.0
        %v308 = vadd.f32 %v304, %v249
        %v309 = vadd.f32 %v305, %v250
        %v310 = vadd.f32 %v306, %v251
        %v311 = vadd.f32 %v307, %v252
        %312 = vst [vmem:[%s248] sm:$0x3] %v308
        %313 = vst [vmem:[%s248 + $0x2] sm:$0x3] %v309
        %314 = vst [vmem:[%s248 + $0x4] sm:$0x3] %v310
        %315 = vst [vmem:[%s248 + $0x6] sm:$0x3] %v311
        %s316 = sand.u32 %s122, 1
        %s317 = scalar_lea.sflag [#allocation4], %s316
        %s318 = sand.u32 %s122, 1
        %s319 = smul.addr %s318, 8
        %s320 = scalar_lea.vmem [#allocation7], %s319
        // Predicated region
        $region41: #{tpu_custom_call.1} parent=31 // pred_check
          %p321 = pneg %p132
        $region42: #{tpu_custom_call.1} parent=31 // pred_check_branch
          %323 = sbr.rel (%p321) target = $region44
        $region43: #{tpu_custom_call.1} parent=31 // pred_region
          %s325 = ssub.s32 128, 128
          %326 = vsyncadd %s317, %s325
          %s327 = smul.addr %s27, 4
          %s328 = sadd.s32 %s28, %s327
          %s329 = smul.addr %s328, 32
          %s330 = scalar_lea.hbm %s3, %s329
          %s331 = sshll.u32 %s320, 4
          %s332 = int_to_ptr.vmem [resolvable:$true] %s331
          %337 = dma.vmem_to_hbm [thread:$0]  %s332, 128, %s330, %s317, 32, 32, 2
        $region44: #{tpu_custom_call.1} parent=31 // pred_fallthru
          _
      $region32: #{tpu_custom_call.1} parent=5 // pred_fallthru
        _
      %p338 = scmp.le.s32.totalorder 2, %s18
      // Predicated region
      $region45: #{tpu_custom_call.1} parent=5 // pred_check
        %p339 = pneg %p338
      $region46: #{tpu_custom_call.1} parent=5 // pred_check_branch
        %341 = sbr.rel (%p339) target = $region48
      $region47: #{tpu_custom_call.1} parent=5 // pred_region
        %s342 = ssub.s32 %s18, 2
        // Predicated region
        $region49: #{tpu_custom_call.1} parent=47 // pred_check
          %p343 = pneg %p138
        $region50: #{tpu_custom_call.1} parent=47 // pred_check_branch
          %345 = sbr.rel (%p343) target = $region52
        $region51: #{tpu_custom_call.1} parent=47 // pred_region
          %s346 = sand.u32 %s123, 1
          %s347 = scalar_lea.sflag [#allocation4], %s346
          %s348 = sand.u32 %s123, 1
          %s349 = smul.addr %s348, 8
          %s350 = scalar_lea.vmem [#allocation7], %s349
          %351 = dma.done %s347, 128
        $region52: #{tpu_custom_call.1} parent=47 // pred_fallthru
          _
      $region48: #{tpu_custom_call.1} parent=5 // pred_fallthru
        _
    $region6: #{tpu_custom_call.1} parent=1 // loop_footer
      %s22 = sadd.s32 1, %s18
    $region7: #{tpu_custom_call.1} parent=1 // loop_footer_branch
      %17 = sbr.rel target = $region3
    $region8: #{tpu_custom_call.1} parent=1 // loop_exit
      _
    %352 = vsyncpa [#allocation3], 1
    %s353 = scalar_lea.sflag [#allocation3], 1
    %354 = vsyncpa %s353, 1
    %355 = vsyncpa [#allocation6], 1
    %s356 = scalar_lea.sflag [#allocation6], 1
    %357 = vsyncpa %s356, 1
    %358 = vsyncpa [#allocation4], 1
    %s359 = scalar_lea.sflag [#allocation4], 1
    %360 = vsyncpa %s359, 1

</llo_original>
